<compile_context>
chip_gen: v6e
topology: v6e:2x2x1
jax: 0.10.0
libtpu: 0.0.40
codegen_flags: <defaults>
</compile_context>

<pallas_src>
import functools
import math

import jax
import jax.numpy as jnp
from jax.experimental import pallas as pl
from jax.experimental.pallas import tpu as pltpu


# ------------------------------ helpers -------------------------------------


def _round_up(x, m):
    return (x + m - 1) // m * m


def _pick_tile(padded, candidates, max_bytes=None, bytes_per_unit=0):
    """Largest candidate tile dividing `padded` that fits the byte budget."""
    for c in candidates:
        if padded % c != 0:
            continue
        if max_bytes is not None and c * bytes_per_unit > max_bytes:
            continue
        return c
    return candidates[-1]


_ACT_FNS = {
    "ReLU": lambda x: jnp.maximum(x, 0.0),
    "LeakyReLU": lambda x: jnp.where(x >= 0.0, x, 0.01 * x),
    "Sigmoid": jax.nn.sigmoid,
    "Tanh": jnp.tanh,
    "ELU": lambda x: jnp.where(x > 0.0, x, jnp.expm1(x)),
    "GELU": jax.nn.gelu,
}


# ---------------------------- Pallas kernels --------------------------------


def _conv_matmul_act_kernel(w_ref, p_ref, b_ref, o_ref, *, act_name):
    # w_ref: (Cout, K)  p_ref: (K, TM)  b_ref: (Cout, 1)  o_ref: (Cout, TM)
    acc = jnp.dot(w_ref[...], p_ref[...], preferred_element_type=jnp.float32)
    acc = acc + b_ref[...]
    if act_name is not None:
        acc = _ACT_FNS[act_name](acc)
    o_ref[...] = acc.astype(o_ref.dtype)


def _pool_reduce_kernel(p_ref, o_ref, *, mode, inv_count):
    # p_ref: (k*k, TR, TM) window slabs; o_ref: (TR, TM) lane-dense output.
    x = p_ref[...]
    if mode == "max":
        r = jnp.max(x, axis=0)          # elementwise VPU max over k*k slabs
    else:  # 'ave'
        r = jnp.sum(x, axis=0) * inv_count
    o_ref[...] = r.astype(o_ref.dtype)


# ------------------------------ wrappers ------------------------------------


def conv_encode(x, weight, bias, pool_size, activation="ReLU"):
    """Conv2d(k=stride=pool_size, pad=0) + bias + activation, NCHW in/out."""
    N, Cin, H, W = x.shape
    Cout, Cin_w, kh, kw = weight.shape
    assert Cin == Cin_w and kh == kw == pool_size
    if activation is not None and activation not in _ACT_FNS:
        raise NotImplementedError(f"activation {activation!r} not supported")
    k = pool_size
    Ho = (H - k) // k + 1
    Wo = (W - k) // k + 1
    K = Cin * k * k
    M = Ho * Wo

    # Patch extraction, transposed so the lane axis is the spatial axis:
    # patches_t[n, (cin,kh,kw), (ho,wo)] = x[n, cin, ho*k+kh, wo*k+kw].
    # TODO(synk): this still materializes one permuted copy of the input in
    # HBM; a fully in-kernel gather would need manual DMA.
    xc = x[:, :, : Ho * k, : Wo * k]
    patches_t = xc.reshape(N, Cin, Ho, k, Wo, k)
    patches_t = patches_t.transpose(0, 1, 3, 5, 2, 4).reshape(N, K, M)

    # Lane-dense tiling of the spatial axis (multiple of 128, VMEM bounded).
    m_pad = _round_up(M, 128)
    tm = _pick_tile(m_pad, (4096, 2048, 1024, 512, 256, 128),
                    max_bytes=8 * 1024 * 1024,
                    bytes_per_unit=(K + Cout) * 4 * 2)
    if m_pad != M:
        patches_t = jnp.pad(patches_t, ((0, 0), (0, 0), (0, m_pad - M)))

    w_mat = weight.reshape(Cout, K)
    b_col = bias.reshape(Cout, 1)

    kern = functools.partial(_conv_matmul_act_kernel, act_name=activation)
    out_t = pl.pallas_call(
        kern,
        out_shape=jax.ShapeDtypeStruct((N, Cout, m_pad), x.dtype),
        grid_spec=pl.GridSpec(
            grid=(N, m_pad // tm),
            in_specs=[
                pl.BlockSpec((Cout, K), lambda n, m: (0, 0)),        # resident
                pl.BlockSpec((None, K, tm), lambda n, m: (n, 0, m)),
                pl.BlockSpec((Cout, 1), lambda n, m: (0, 0)),        # resident
            ],
            out_specs=pl.BlockSpec((None, Cout, tm), lambda n, m: (n, 0, m)),
        ),
        compiler_params=pltpu.CompilerParams(
            dimension_semantics=("parallel", "parallel")),
    )(w_mat, patches_t, b_col)

    # (N, Cout, Ho*Wo) is already NCHW order -> no output transpose.
    return out_t[:, :, :M].reshape(N, Cout, Ho, Wo)


def pool_encode(x, pool_size, mode):
    """MaxPool2d / AvgPool2d with kernel=stride=pool_size, padding=0 (NCHW)."""
    N, C, H, W = x.shape
    k = pool_size
    Ho, Wo = H // k, W // k
    R = N * C
    M = Ho * Wo
    kk = k * k

    # Window slabs: win[kh*k+kw, (n,c), (ho,wo)] = x[n, c, ho*k+kh, wo*k+kw].
    # TODO(synk): one permuted copy of the input is still written to HBM here.
    xc = x[:, :, : Ho * k, : Wo * k]
    win = xc.reshape(N, C, Ho, k, Wo, k).transpose(3, 5, 0, 1, 2, 4)
    win = win.reshape(kk, R, M)

    r_pad = _round_up(R, 8)
    tr = _pick_tile(r_pad, (256, 128, 64, 32, 16, 8))
    m_pad = _round_up(M, 128)
    tm = _pick_tile(m_pad, (2048, 1024, 512, 256, 128),
                    max_bytes=8 * 1024 * 1024,
                    bytes_per_unit=(kk + 1) * tr * 4 * 2)
    if (r_pad, m_pad) != (R, M):
        win = jnp.pad(win, ((0, 0), (0, r_pad - R), (0, m_pad - M)))

    kern = functools.partial(_pool_reduce_kernel, mode=mode, inv_count=1.0 / kk)
    out = pl.pallas_call(
        kern,
        out_shape=jax.ShapeDtypeStruct((r_pad, m_pad), x.dtype),
        grid_spec=pl.GridSpec(
            grid=(r_pad // tr, m_pad // tm),
            in_specs=[pl.BlockSpec((kk, tr, tm), lambda r, m: (0, r, m))],
            out_specs=pl.BlockSpec((tr, tm), lambda r, m: (r, m)),
        ),
        compiler_params=pltpu.CompilerParams(
            dimension_semantics=("parallel", "parallel")),
    )(win)

    return out[:R, :M].reshape(N, C, Ho, Wo)


# ------------------------------ module port ----------------------------------


class EncodeLayer:
    """JAX/Pallas port of the PyTorch EncodeLayer (forward pass only)."""

    def __init__(self, channel_in, channel_out, pool_size, pool,
                 kernel_size="auto", activation="ReLU", batch_norm=False,
                 key=None):
        if pool not in [False, True, "max", "ave"]:
            raise ValueError("Invalid pool keyword")
        if pool is True:
            pool = "max"
        self.pool = pool
        self.pool_size = pool_size
        self.activation = activation
        self.batch_norm = batch_norm

        if pool is False:
            if batch_norm:
                # TODO(synk): BatchNorm2d path not implemented (module default
                # is batch_norm=False); refuse rather than silently diverge.
                raise NotImplementedError("batch_norm=True is not supported")
            if activation is not None and activation not in _ACT_FNS:
                raise NotImplementedError(
                    f"activation {activation!r} is not supported")
            if kernel_size == "auto":
                kernel_size = pool_size
            assert kernel_size == pool_size, \
                "patch-conv kernel assumes kernel_size == stride"
            # xavier_normal_ init (gain=1): std = sqrt(2 / (fan_in + fan_out))
            fan_in = channel_in * kernel_size * kernel_size
            fan_out = channel_out * kernel_size * kernel_size
            std = math.sqrt(2.0 / (fan_in + fan_out))
            wkey = key if key is not None else jax.random.PRNGKey(0)
            self.weight = std * jax.random.normal(
                wkey, (channel_out, channel_in, kernel_size, kernel_size),
                jnp.float32)
            self.bias = jnp.zeros((channel_out,), jnp.float32)

    def __call__(self, x):
        if self.pool in ["max", "ave"]:
            return pool_encode(x, self.pool_size, self.pool)
        return conv_encode(x, self.weight, self.bias, self.pool_size,
                           self.activation)


# --------------------------------- main ---------------------------------------


if __name__ == "__main__":
    key = jax.random.PRNGKey(0)
    kx, kw, kb, kx2, kw2 = jax.random.split(key, 5)

    N, Cin, H, W = 2, 4, 16, 16
    Cout, pool_size = 8, 2
    x = jax.random.normal(kx, (N, Cin, H, W), jnp.float32)

    # --- conv branch (pool=False): Conv2d(k=2, stride=2) + bias + ReLU ------
    layer = EncodeLayer(Cin, Cout, pool_size, pool=False, key=kw)
    layer.bias = 0.1 * jax.random.normal(kb, (Cout,), jnp.float32)  # exercise bias
    y = jax.block_until_ready(layer(x))
    assert y.shape == (N, Cout, H // pool_size, W // pool_size)

    ref = jax.lax.conv_general_dilated(
        x, layer.weight, window_strides=(pool_size, pool_size),
        padding="VALID", dimension_numbers=("NCHW", "OIHW", "NCHW"),
        precision=jax.lax.Precision.HIGHEST)
    ref = jnp.maximum(ref + layer.bias.reshape(1, -1, 1, 1), 0.0)
    assert jnp.allclose(y, ref, atol=1e-4, rtol=1e-4), \
        float(jnp.max(jnp.abs(y - ref)))

    # --- conv branch, odd shapes + LeakyReLU (exercises M padding path) -----
    x2 = jax.random.normal(kx2, (2, 3, 36, 44), jnp.float32)
    layer2 = EncodeLayer(3, 5, 2, pool=False, activation="LeakyReLU", key=kw2)
    y2 = jax.block_until_ready(layer2(x2))
    ref2 = jax.lax.conv_general_dilated(
        x2, layer2.weight, window_strides=(2, 2), padding="VALID",
        dimension_numbers=("NCHW", "OIHW", "NCHW"),
        precision=jax.lax.Precision.HIGHEST)
    ref2 = ref2 + layer2.bias.reshape(1, -1, 1, 1)
    ref2 = jnp.where(ref2 >= 0.0, ref2, 0.01 * ref2)
    assert y2.shape == (2, 5, 18, 22)
    assert jnp.allclose(y2, ref2, atol=1e-4, rtol=1e-4), \
        float(jnp.max(jnp.abs(y2 - ref2)))

    # --- pooling branch (pool='max') -----------------------------------------
    layer_mp = EncodeLayer(Cin, Cin, pool_size, pool="max")
    y_mp = jax.block_until_ready(layer_mp(x))
    ref_mp = x.reshape(N, Cin, H // 2, 2, W // 2, 2).max(axis=(3, 5))
    assert jnp.allclose(y_mp, ref_mp)

    # --- pooling branch (pool='ave') -----------------------------------------
    layer_ap = EncodeLayer(Cin, Cin, pool_size, pool="ave")
    y_ap = jax.block_until_ready(layer_ap(x))
    ref_ap = x.reshape(N, Cin, H // 2, 2, W // 2, 2).mean(axis=(3, 5))
    assert jnp.allclose(y_ap, ref_ap, atol=1e-6, rtol=1e-6)

    # --- pooling with k=3 on non-divisible spatial dims (crop semantics) ----
    x3 = jax.random.normal(jax.random.PRNGKey(3), (2, 4, 16, 18), jnp.float32)
    layer_mp3 = EncodeLayer(4, 4, 3, pool="max")
    y_mp3 = jax.block_until_ready(layer_mp3(x3))
    ref_mp3 = x3[:, :, :15, :18].reshape(2, 4, 5, 3, 6, 3).max(axis=(3, 5))
    assert jnp.allclose(y_mp3, ref_mp3)

    print("KERNEL_OK")
</pallas_src>

<mosaic_0001>
module attributes {stable_mosaic.version = 11 : i64} {
  func.func @_conv_matmul_act_kernel(%arg0: i32, %arg1: i32, %arg2: memref<8x16xf32, #tpu.memory_space<vmem>>, %arg3: memref<1x16x128xf32, #tpu.memory_space<vmem>>, %arg4: memref<8x1xf32, #tpu.memory_space<vmem>>, %arg5: memref<1x8x128xf32, #tpu.memory_space<vmem>>) attributes {dimension_semantics = [#tpu.dimension_semantics<parallel>, #tpu.dimension_semantics<parallel>], iteration_bounds = array<i64: 2, 1>, scalar_prefetch = 0 : i64, scratch_operands = 0 : i64, tpu.core_type = #tpu.core_type<tc>, window_params = [{pipeline_mode = #tpu.pipeline_mode<synchronous>, transform_indices = @transform_0, window_bounds = array<i64: 8, 16>}, {transform_indices = @transform_1, window_bounds = array<i64: 1, 16, 128>}, {pipeline_mode = #tpu.pipeline_mode<synchronous>, transform_indices = @transform_2, window_bounds = array<i64: 8, 1>}, {transform_indices = @transform_3, window_bounds = array<i64: 1, 8, 128>}]} {
    %c0 = arith.constant 0 : index
    %c0_0 = arith.constant 0 : index
    %0 = vector.load %arg2[%c0, %c0_0] : memref<8x16xf32, #tpu.memory_space<vmem>>, vector<8x16xf32>
    %c0_1 = arith.constant 0 : index
    %c0_2 = arith.constant 0 : index
    %c0_3 = arith.constant 0 : index
    %1 = vector.load %arg3[%c0_1, %c0_2, %c0_3] : memref<1x16x128xf32, #tpu.memory_space<vmem>>, vector<1x16x128xf32>
    %2 = vector.shape_cast %1 : vector<1x16x128xf32> to vector<16x128xf32>
    %cst = arith.constant dense<0.000000e+00> : vector<8x128xf32>
    %3 = tpu.matmul %0, %2, %cst {dimension_numbers = #tpu.dot_dimension_numbers<[1], [0], [0], [1], [0, 0, 1, 1], [], []>} : vector<8x16xf32>, vector<16x128xf32>, vector<8x128xf32> -> vector<8x128xf32>
    %c0_4 = arith.constant 0 : index
    %c0_5 = arith.constant 0 : index
    %4 = vector.load %arg4[%c0_4, %c0_5] : memref<8x1xf32, #tpu.memory_space<vmem>>, vector<8x1xf32>
    %5 = vector.broadcast %4 : vector<8x1xf32> to vector<8x128xf32>
    %6 = arith.addf %3, %5 : vector<8x128xf32>
    %cst_6 = arith.constant 0.000000e+00 : f32
    %7 = vector.broadcast %cst_6 : f32 to vector<8x128xf32>
    %8 = arith.maximumf %6, %7 : vector<8x128xf32>
    %c0_7 = arith.constant 0 : index
    %c0_8 = arith.constant 0 : index
    %c0_9 = arith.constant 0 : index
    %9 = vector.load %arg5[%c0_7, %c0_8, %c0_9] : memref<1x8x128xf32, #tpu.memory_space<vmem>>, vector<1x8x128xf32>
    %10 = vector.shape_cast %9 : vector<1x8x128xf32> to vector<8x128xf32>
    %11 = vector.shape_cast %8 : vector<8x128xf32> to vector<1x8x128xf32>
    tpu.vector_store %arg5[%c0_7, %c0_8, %c0_9], %11 {strides = array<i32>} : memref<1x8x128xf32, #tpu.memory_space<vmem>>, vector<1x8x128xf32>,
    return
  }
  func.func @transform_0(%arg0: i32, %arg1: i32) -> (i32, i32) {
    %c0_i32 = arith.constant 0 : i32
    %c0_i32_0 = arith.constant 0 : i32
    %c0_i32_1 = arith.constant 0 : i32
    return %c0_i32, %c0_i32_0 : i32, i32
  }
  func.func @transform_1(%arg0: i32, %arg1: i32) -> (i32, i32, i32) {
    %c0_i32 = arith.constant 0 : i32
    %c0_i32_0 = arith.constant 0 : i32
    return %arg0, %c0_i32, %arg1 : i32, i32, i32
  }
  func.func @transform_2(%arg0: i32, %arg1: i32) -> (i32, i32) {
    %c0_i32 = arith.constant 0 : i32
    %c0_i32_0 = arith.constant 0 : i32
    %c0_i32_1 = arith.constant 0 : i32
    return %c0_i32, %c0_i32_0 : i32, i32
  }
  func.func @transform_3(%arg0: i32, %arg1: i32) -> (i32, i32, i32) {
    %c0_i32 = arith.constant 0 : i32
    %c0_i32_0 = arith.constant 0 : i32
    return %arg0, %c0_i32, %arg1 : i32, i32, i32
  }
}

</mosaic_0001>

<llo_original>
// kernel: tpu_custom_call.1
$region0: #{tpu_custom_call.1}
  #allocation0 [shape = 'u32[]', space=smem, size = 0x4, offset = 0x4, fixed_abs, tag = 'smem constant byte address 0x4 - core index']
  #allocation1 [shape = 'u32[144,128]{1,0:T(1,128)}', space=vmem, size = 0x12000, scoped, tag = 'internal scratch']
  %s0 = inlined_call_operand.vmem [shape: f32[8,16], index: 0, kind: input, shape index: {}]
  %s1 = inlined_call_operand.hbm [shape: f32[2,16,128], index: 1, kind: input, shape index: {}]
  %s2 = inlined_call_operand.vmem [shape: f32[8,1], index: 2, kind: input, shape index: {}]
  %s3 = inlined_call_operand.hbm [shape: f32[2,8,128], index: 3, kind: output, shape index: {}]
  %s4 = sld [smem:[#allocation0]]
  $region49: #{tpu_custom_call.1} parent=0
    _
  %s6 = ssub.s32 1, %s4
  %s7 = scalar_select 0, %s6, %s4
  $region1: #{tpu_custom_call.1} parent=0
    #allocation2 [shape = 'u8[16384]{0}', space=vmem, size = 0x4000, scoped, tag = 'input window, operand 1']
    #allocation3 [shape = 's32[2]{0}', space=sflag, size = 0x8, scoped, tag = 'scoped memory for tpu_custom_call.1']
    #allocation4 [shape = 's32[2]{0}', space=sflag, size = 0x8, scoped, tag = 'scoped memory for tpu_custom_call.1']
    #allocation5 [shape = 'u8[8192]{0}', space=vmem, size = 0x2000, scoped, tag = 'output window, operand 0']
    %8 = vsyncpa [#allocation3], 0
    %s9 = scalar_lea.sflag [#allocation3], 1
    %10 = vsyncpa %s9, 0
    %11 = vsyncpa [#allocation4], 0
    %s12 = scalar_lea.sflag [#allocation4], 1
    %13 = vsyncpa %s12, 0
    loop: start=0, step=1, limit=4
    $region2: #{tpu_custom_call.1} parent=1 // loop_pre_header
      _
    $region3: #{tpu_custom_call.1} parent=1 // loop_header
      %s15 = sphi 0, %s19
      %p16 = scmp.ge.s32.totalorder %s15, 4
      %s22 = sphi 0, %s34
      %s23 = sphi 0, %s30
      %s24 = sphi 0, %s22
      %s25 = sphi 0, %s23
      %s26 = sphi 0, %s24
      %s27 = sphi 0, %s25
      %s35 = sphi 0, %s35
      %s37 = sphi 0, %s35
      %s38 = sphi 0, %s37
      %s52 = sphi 0, %s38
      %s60 = sphi 0, %s62
      %s63 = sphi 0, %s60
      %s64 = sphi 0, %s63
      %s80 = sphi 0, %s64
      %s84 = sphi 0, %s84
      %s86 = sphi 0, %s84
      %s87 = sphi 0, %s86
      %s101 = sphi 0, %s87
      %s109 = sphi 0, %s111
      %s112 = sphi 0, %s109
      %s113 = sphi 0, %s112
      %s129 = sphi 0, %s113
    $region4: #{tpu_custom_call.1} parent=1 // loop_header_branch
      %18 = sbr.rel (%p16) target = $region8
    $region5: #{tpu_custom_call.1} parent=1 // loop_body
      %s20 = ssub.s32 %s15, 1
      %s21 = ssub.s32 %s15, 2
      %s28 = sadd.s32 1, %s23
      %p29 = scmp.ge.s32.totalorder %s28, 1
      %s30 = scalar_select %p29, 0, %s28
      %s31 = sadd.s32 1, %s22
      %s32 = scalar_select %p29, %s31, %s22
      %p33 = scmp.ge.s32.totalorder %s32, 2
      %s34 = scalar_select %p33, 0, %s32
      %s36 = sadd.s32 %s35, 1
      %p39 = scmp.eq.s32.totalorder %s15, 1
      %p40 = scmp.ne.s32.totalorder %s35, %s37
      %p41 = scmp.eq.s32.totalorder %s15, 0
      %p42 = por %p40, %p41
      %p43 = scmp.ne.s32.totalorder %s35, %s37
      %p44 = scmp.eq.s32.totalorder %s20, 1
      %p45 = por %p43, %p44
      %p46 = scmp.ne.s32.totalorder %s37, %s38
      %p47 = scmp.eq.s32.totalorder %s20, 0
      %p48 = por %p46, %p47
      %p49 = scmp.ne.s32.totalorder %s37, %s38
      %p50 = scmp.eq.s32.totalorder %s21, 1
      %p51 = por %p49, %p50
      %p53 = scmp.ne.s32.totalorder %s38, %s52
      %p54 = scmp.eq.s32.totalorder %s21, 0
      %p55 = por %p53, %p54
      %s56 = ssub.s32 %s22, %s34
      %s57 = ssub.s32 %s23, %s30
      %s58 = sor.u32 %s56, %s57
      %p59 = scmp.eq.s32.totalorder %s58, 0
      %s61 = sadd.s32 %s60, 1
      %s62 = scalar_select %p59, %s60, %s61
      %p65 = pneg %p59
      %p66 = scmp.eq.s32.totalorder %s15, 1
      %p67 = por %p65, %p66
      %p68 = scmp.ne.s32.totalorder %s60, %s63
      %p69 = scmp.eq.s32.totalorder %s15, 0
      %p70 = por %p68, %p69
      %p71 = scmp.ne.s32.totalorder %s60, %s63
      %p72 = scmp.eq.s32.totalorder %s20, 1
      %p73 = por %p71, %p72
      %p74 = scmp.ne.s32.totalorder %s63, %s64
      %p75 = scmp.eq.s32.totalorder %s20, 0
      %p76 = por %p74, %p75
      %p77 = scmp.ne.s32.totalorder %s63, %s64
      %p78 = scmp.eq.s32.totalorder %s21, 1
      %p79 = por %p77, %p78
      %p81 = scmp.ne.s32.totalorder %s64, %s80
      %p82 = scmp.eq.s32.totalorder %s21, 0
      %p83 = por %p81, %p82
      %s85 = sadd.s32 %s84, 1
      %p88 = scmp.eq.s32.totalorder %s15, 1
      %p89 = scmp.ne.s32.totalorder %s84, %s86
      %p90 = scmp.eq.s32.totalorder %s15, 0
      %p91 = por %p89, %p90
      %p92 = scmp.ne.s32.totalorder %s84, %s86
      %p93 = scmp.eq.s32.totalorder %s20, 1
      %p94 = por %p92, %p93
      %p95 = scmp.ne.s32.totalorder %s86, %s87
      %p96 = scmp.eq.s32.totalorder %s20, 0
      %p97 = por %p95, %p96
      %p98 = scmp.ne.s32.totalorder %s86, %s87
      %p99 = scmp.eq.s32.totalorder %s21, 1
      %p100 = por %p98, %p99
      %p102 = scmp.ne.s32.totalorder %s87, %s101
      %p103 = scmp.eq.s32.totalorder %s21, 0
      %p104 = por %p102, %p103
      %s105 = ssub.s32 %s22, %s34
      %s106 = ssub.s32 %s23, %s30
      %s107 = sor.u32 %s105, %s106
      %p108 = scmp.eq.s32.totalorder %s107, 0
      %s110 = sadd.s32 %s109, 1
      %s111 = scalar_select %p108, %s109, %s110
      %p114 = pneg %p108
      %p115 = scmp.eq.s32.totalorder %s15, 1
      %p116 = por %p114, %p115
      %p117 = scmp.ne.s32.totalorder %s109, %s112
      %p118 = scmp.eq.s32.totalorder %s15, 0
      %p119 = por %p117, %p118
      %p120 = scmp.ne.s32.totalorder %s109, %s112
      %p121 = scmp.eq.s32.totalorder %s20, 1
      %p122 = por %p120, %p121
      %p123 = scmp.ne.s32.totalorder %s112, %s113
      %p124 = scmp.eq.s32.totalorder %s20, 0
      %p125 = por %p123, %p124
      %p126 = scmp.ne.s32.totalorder %s112, %s113
      %p127 = scmp.eq.s32.totalorder %s21, 1
      %p128 = por %p126, %p127
      %p130 = scmp.ne.s32.totalorder %s113, %s129
      %p131 = scmp.eq.s32.totalorder %s21, 0
      %p132 = por %p130, %p131
      %p133 = scmp.le.s32.totalorder 1, %s15
      %p134 = scmp.lt.s32.totalorder %s15, 3
      %p135 = pnand %p133, %p134
      %p136 = pneg %p135
      // Predicated region
      $region9: #{tpu_custom_call.1} parent=5 // pred_check
        _
      $region10: #{tpu_custom_call.1} parent=5 // pred_check_branch
        %138 = sbr.rel (%p135) target = $region12
      $region11: #{tpu_custom_call.1} parent=5 // pred_region
        %s139 = ssub.s32 %s15, 1
        // Predicated region
        $region13: #{tpu_custom_call.1} parent=11 // pred_check
          %p140 = pneg %p48
        $region14: #{tpu_custom_call.1} parent=11 // pred_check_branch
          %142 = sbr.rel (%p140) target = $region16
        $region15: #{tpu_custom_call.1} parent=11 // pred_region
          _
        $region16: #{tpu_custom_call.1} parent=11 // pred_fallthru
          _
        // Predicated region
        $region17: #{tpu_custom_call.1} parent=11 // pred_check
          %p143 = pneg %p97
        $region18: #{tpu_custom_call.1} parent=11 // pred_check_branch
          %145 = sbr.rel (%p143) target = $region20
        $region19: #{tpu_custom_call.1} parent=11 // pred_region
          _
        $region20: #{tpu_custom_call.1} parent=11 // pred_fallthru
          _
      $region12: #{tpu_custom_call.1} parent=5 // pred_fallthru
        _
      %p146 = scmp.lt.s32.totalorder %s15, 2
      // Predicated region
      $region21: #{tpu_custom_call.1} parent=5 // pred_check
        %p147 = pneg %p146
      $region22: #{tpu_custom_call.1} parent=5 // pred_check_branch
        %149 = sbr.rel (%p147) target = $region24
      $region23: #{tpu_custom_call.1} parent=5 // pred_region
        // Predicated region
        $region25: #{tpu_custom_call.1} parent=23 // pred_check
          %p150 = pneg %p70
        $region26: #{tpu_custom_call.1} parent=23 // pred_check_branch
          %152 = sbr.rel (%p150) target = $region28
        $region27: #{tpu_custom_call.1} parent=23 // pred_region
          %s153 = sand.u32 %s60, 1
          %s154 = scalar_lea.sflag [#allocation3], %s153
          %s155 = sand.u32 %s60, 1
          %s156 = smul.addr %s155, 16
          %s157 = scalar_lea.vmem [#allocation2], %s156
          %s159 = ssub.s32 256, 256
          %160 = vsyncadd %s154, %s159
          %s161 = smul.addr %s22, 2
          %s162 = sadd.s32 %s23, %s161
          %s163 = smul.addr %s162, 128
          %s164 = scalar_lea.hbm %s1, %s163
          %s165 = sshll.u32 %s157, 4
          %s166 = int_to_ptr.vmem [resolvable:$true] %s165
          %171 = dma.hbm_to_vmem [thread:$0]  %s164, 256, %s166, %s154, 128, 128, 8
        $region28: #{tpu_custom_call.1} parent=23 // pred_fallthru
          _
      $region24: #{tpu_custom_call.1} parent=5 // pred_fallthru
        _
      %p172 = scmp.le.s32.totalorder 1, %s15
      %p173 = scmp.lt.s32.totalorder %s15, 3
      %p174 = pnand %p172, %p173
      %p175 = pneg %p174
      // Predicated region
      $region29: #{tpu_custom_call.1} parent=5 // pred_check
        _
      $region30: #{tpu_custom_call.1} parent=5 // pred_check_branch
        %177 = sbr.rel (%p174) target = $region32
      $region31: #{tpu_custom_call.1} parent=5 // pred_region
        %s178 = ssub.s32 %s15, 1
        %s179 = sand.u32 %s63, 1
        %s180 = scalar_lea.sflag [#allocation3], %s179
        %s181 = sand.u32 %s63, 1
        %s182 = smul.addr %s181, 16
        %s183 = scalar_lea.vmem [#allocation2], %s182
        // Predicated region
        $region33: #{tpu_custom_call.1} parent=31 // pred_check
          %p184 = pneg %p76
        $region34: #{tpu_custom_call.1} parent=31 // pred_check_branch
          %186 = sbr.rel (%p184) target = $region36
        $region35: #{tpu_custom_call.1} parent=31 // pred_region
          %187 = dma.done %s180, 256
        $region36: #{tpu_custom_call.1} parent=31 // pred_fallthru
          _
        %p188 = pneg %p48
        %p189 = pneg %p45
        %s190 = sand.u32 %s63, 1
        %s191 = scalar_lea.sflag [#allocation3], %s190
        %s192 = sand.u32 %s63, 1
        %s193 = smul.addr %s192, 16
        %s194 = scalar_lea.vmem [#allocation2], %s193
        %p195 = pneg %p76
        %p196 = pneg %p73
        %p197 = pneg %p97
        %p198 = pneg %p94
        %p199 = pneg %p125
        %p200 = pneg %p122
        %s201 = sand.u32 %s112, 1
        %s202 = scalar_lea.sflag [#allocation4], %s201
        %s203 = sand.u32 %s112, 1
        %s204 = smul.addr %s203, 8
        %s205 = scalar_lea.vmem [#allocation5], %s204
        %v206 = vld [vmem:[%s0] sm:$0xff]
        %v207 = vld [vmem:[%s183] sm:$0xff]
        %v208 = vld [vmem:[%s183 + $0x8] sm:$0xff]
        %v209 = vld [vmem:[%s2] sm:$0xff]
        %211 = vset.pattern.permute.xlu0 0
        %212 = vperm.xlu0 %211, %v209
        %v213 = vpop.permute.xlu0 %212
        %vm215 = vcmask 130048
        %v217 = vsel %vm215, %v206, 0
        %219 = vmatprep.subr.mxu0 0.0
        %220 = vmatpush1.msra.mxu0 0.0
        %221 = vmatprep.subr.mxu0 0.0
        %222 = vmatpush1.msra.mxu0 0.0
        %223 = vmatprep.subr.mxu0 0.0
        %224 = vmatpush1.msra.mxu0 0.0
        %225 = vmatprep.subr.mxu0 0.0
        %226 = vmatpush1.msra.mxu0 0.0
        %227 = vmatprep.subr.mxu0 0.0
        %228 = vmatpush1.msra.mxu0 0.0
        %229 = vmatprep.subr.mxu0 0.0
        %230 = vmatpush1.msra.mxu0 0.0
        %231 = vmatprep.subr.mxu0 0.0
        %232 = vmatpush1.msra.mxu0 0.0
        %233 = vmatprep.subr.mxu0 0.0
        %234 = vmatpush1.msra.mxu0 0.0
        %235 = vmatprep.subr.mxu0 0.0
        %236 = vmatpush1.msra.mxu0 0.0
        %237 = vmatprep.subr.mxu0 0.0
        %238 = vmatpush1.msra.mxu0 0.0
        %239 = vmatprep.subr.mxu0 0.0
        %240 = vmatpush1.msra.mxu0 0.0
        %241 = vmatprep.subr.mxu0 0.0
        %242 = vmatpush1.msra.mxu0 0.0
        %243 = vmatprep.subr.mxu0 0.0
        %244 = vmatpush1.msra.mxu0 0.0
        %245 = vmatprep.subr.mxu0 0.0
        %246 = vmatpush1.msra.mxu0 0.0
        %247 = vmatprep.subr.mxu0 0.0
        %248 = vmatpush1.msra.mxu0 %v208
        %249 = vmatprep.subr.mxu0 0.0
        %250 = vmatpush1.msra.mxu0 %v207
        %251 = vmatprep.subr.mxu0 0.0
        %252 = vmatpush2.msra.mxu0 0.0
        %253 = vmatprep.subr.mxu0 0.0
        %254 = vmatpush2.msra.mxu0 0.0
        %255 = vmatprep.subr.mxu0 0.0
        %256 = vmatpush2.msra.mxu0 0.0
        %257 = vmatprep.subr.mxu0 0.0
        %258 = vmatpush2.msra.mxu0 0.0
        %259 = vmatprep.subr.mxu0 0.0
        %260 = vmatpush2.msra.mxu0 0.0
        %261 = vmatprep.subr.mxu0 0.0
        %262 = vmatpush2.msra.mxu0 0.0
        %263 = vmatprep.subr.mxu0 0.0
        %264 = vmatpush2.msra.mxu0 0.0
        %265 = vmatprep.subr.mxu0 0.0
        %266 = vmatpush2.msra.mxu0 0.0
        %267 = vmatprep.subr.mxu0 0.0
        %268 = vmatpush2.msra.mxu0 0.0
        %269 = vmatprep.subr.mxu0 0.0
        %270 = vmatpush2.msra.mxu0 0.0
        %271 = vmatprep.subr.mxu0 0.0
        %272 = vmatpush2.msra.mxu0 0.0
        %273 = vmatprep.subr.mxu0 0.0
        %274 = vmatpush2.msra.mxu0 0.0
        %275 = vmatprep.subr.mxu0 0.0
        %276 = vmatpush2.msra.mxu0 0.0
        %277 = vmatprep.subr.mxu0 0.0
        %278 = vmatpush2.msra.mxu0 0.0
        %279 = vmatprep.subr.mxu0 0.0
        %280 = vmatpush2.msra.mxu0 0.0
        %281 = vmatprep.subr.mxu0 0.0
        %282 = vmatpush2.msra.mxu0 0.0
        %283 = vmatprep.mubr.f32.mxu0 0.0
        %284 = vmatmul.mubr.f32.gmra.mxu0 %v217
        %v285 = vpop.f32.mrf.mxu0
        %v286 = vadd.f32 %v213, %v285
        %v287 = vpop.f32.mrf.mxu0
        %288 = vdwg.mxu0
        %v289 = vmax.f32 %v286, 0.0
        %290 = vst [vmem:[%s205] sm:$0xff] %v289
        %s291 = sand.u32 %s112, 1
        %s292 = scalar_lea.sflag [#allocation4], %s291
        %s293 = sand.u32 %s112, 1
        %s294 = smul.addr %s293, 8
        %s295 = scalar_lea.vmem [#allocation5], %s294
        // Predicated region
        $region37: #{tpu_custom_call.1} parent=31 // pred_check
          %p296 = pneg %p122
        $region38: #{tpu_custom_call.1} parent=31 // pred_check_branch
          %298 = sbr.rel (%p296) target = $region40
        $region39: #{tpu_custom_call.1} parent=31 // pred_region
          %s300 = ssub.s32 128, 128
          %301 = vsyncadd %s292, %s300
          %s302 = sadd.s32 %s25, %s24
          %s303 = smul.addr %s302, 128
          %s304 = scalar_lea.hbm %s3, %s303
          %s306 = sshll.u32 %s295, 4
          %s307 = int_to_ptr.vmem [resolvable:$true] %s306
          %309 = dma.vmem_to_hbm [thread:$0]  %s307, 128, %s304, %s292
        $region40: #{tpu_custom_call.1} parent=31 // pred_fallthru
          _
      $region32: #{tpu_custom_call.1} parent=5 // pred_fallthru
        _
      %p310 = scmp.le.s32.totalorder 2, %s15
      // Predicated region
      $region41: #{tpu_custom_call.1} parent=5 // pred_check
        %p311 = pneg %p310
      $region42: #{tpu_custom_call.1} parent=5 // pred_check_branch
        %313 = sbr.rel (%p311) target = $region44
      $region43: #{tpu_custom_call.1} parent=5 // pred_region
        %s314 = ssub.s32 %s15, 2
        // Predicated region
        $region45: #{tpu_custom_call.1} parent=43 // pred_check
          %p315 = pneg %p128
        $region46: #{tpu_custom_call.1} parent=43 // pred_check_branch
          %317 = sbr.rel (%p315) target = $region48
        $region47: #{tpu_custom_call.1} parent=43 // pred_region
          %s318 = sand.u32 %s113, 1
          %s319 = scalar_lea.sflag [#allocation4], %s318
          %s320 = sand.u32 %s113, 1
          %s321 = smul.addr %s320, 8
          %s322 = scalar_lea.vmem [#allocation5], %s321
          %323 = dma.done %s319, 128
        $region48: #{tpu_custom_call.1} parent=43 // pred_fallthru
          _
      $region44: #{tpu_custom_call.1} parent=5 // pred_fallthru
        _
    $region6: #{tpu_custom_call.1} parent=1 // loop_footer
      %s19 = sadd.s32 1, %s15
    $region7: #{tpu_custom_call.1} parent=1 // loop_footer_branch
      %14 = sbr.rel target = $region3
    $region8: #{tpu_custom_call.1} parent=1 // loop_exit
      _
    %324 = vsyncpa [#allocation3], 1
    %s325 = scalar_lea.sflag [#allocation3], 1
    %326 = vsyncpa %s325, 1
    %327 = vsyncpa [#allocation4], 1
    %s328 = scalar_lea.sflag [#allocation4], 1
    %329 = vsyncpa %s328, 1

</llo_original>
